<compile_context>
chip_gen: v6e
topology: v6e:2x2x1
jax: 0.10.0
libtpu: 0.0.40
codegen_flags: <defaults>
</compile_context>

<pallas_src>
import jax
import jax.numpy as jnp
from jax.experimental import pallas as pl
from jax.experimental.pallas import tpu as pltpu


def _fused_kernel(x1_ref, x2_ref, inp_ref, out_ref):
    # Row 0 of the matmul result: (1, K) @ (K, N) -> (1, N) on the MXU.
    v1_row0 = jnp.dot(
        x1_ref[0:1, :], x2_ref[...], preferred_element_type=jnp.float32
    )

    # mean(inp, axis=1) as a lane-reduce followed by a constant multiply.
    inv_k = 1.0 / float(inp_ref.shape[1])
    m = jnp.sum(inp_ref[...], axis=1) * inv_k          # shape (N,)

    # t1 = v1[0] + mean(inp, 1), stored as a (1, N) row.
    out_ref[...] = v1_row0 + m[None, :]


@jax.jit
def fused_forward(x1, x2, inp):
    """t1 = (x1 @ x2)[0] + mean(inp, axis=1), fused in a single Pallas kernel."""
    m_rows, k = x1.shape
    n = x2.shape[1]
    r, c = inp.shape

    cost = pl.CostEstimate(
        flops=2 * k * n + r * c + n,           # matmul row + mean-sum + add
        transcendentals=0,
        bytes_accessed=(m_rows * k + k * n + r * c + n) * 4,
    )

    out = pl.pallas_call(
        _fused_kernel,
        out_shape=jax.ShapeDtypeStruct((1, n), jnp.float32),
        # Single grid point; whole-problem blocks (block_shape == array shape)
        # resident in VMEM.
        in_specs=[
            pl.BlockSpec(x1.shape, lambda: (0, 0),
                         memory_space=pltpu.MemorySpace.VMEM),
            pl.BlockSpec(x2.shape, lambda: (0, 0),
                         memory_space=pltpu.MemorySpace.VMEM),
            pl.BlockSpec(inp.shape, lambda: (0, 0),
                         memory_space=pltpu.MemorySpace.VMEM),
        ],
        out_specs=pl.BlockSpec((1, n), lambda: (0, 0),
                               memory_space=pltpu.MemorySpace.VMEM),
        cost_estimate=cost,
    )(x1, x2, inp)
    return out[0]  # -> shape (N,) == (2,)


if __name__ == "__main__":
    key = jax.random.PRNGKey(0)
    k1, k2, k3 = jax.random.split(key, 3)

    x1 = jax.random.normal(k1, (3, 10), dtype=jnp.float32)
    x2 = jax.random.normal(k2, (10, 2), dtype=jnp.float32)
    inp = jax.random.normal(k3, (2, 8), dtype=jnp.float32)

    t1 = fused_forward(x1, x2, inp)
    jax.block_until_ready(t1)

    # Cross-check against plain JAX reference.
    ref = (x1 @ x2)[0] + jnp.mean(inp, axis=1)
    assert t1.shape == (2,)
    assert jnp.allclose(t1, ref, atol=1e-5, rtol=1e-5)

    print("KERNEL_OK")
</pallas_src>

<mosaic_0001>
module attributes {stable_mosaic.version = 11 : i64} {
  func.func @_fused_kernel(%arg0: memref<3x10xf32, #tpu.memory_space<vmem>>, %arg1: memref<10x2xf32, #tpu.memory_space<vmem>>, %arg2: memref<2x8xf32, #tpu.memory_space<vmem>>, %arg3: memref<1x2xf32, #tpu.memory_space<vmem>>) attributes {dimension_semantics = [], scalar_prefetch = 0 : i64, scratch_operands = 0 : i64, tpu.core_type = #tpu.core_type<tc>} {
    %c0 = arith.constant 0 : index
    %c0_0 = arith.constant 0 : index
    %0 = vector.load %arg0[%c0, %c0_0] : memref<3x10xf32, #tpu.memory_space<vmem>>, vector<1x10xf32>
    %c0_1 = arith.constant 0 : index
    %c0_2 = arith.constant 0 : index
    %1 = vector.load %arg1[%c0_1, %c0_2] : memref<10x2xf32, #tpu.memory_space<vmem>>, vector<10x2xf32>
    %cst = arith.constant dense<0.000000e+00> : vector<1x2xf32>
    %2 = tpu.matmul %0, %1, %cst {dimension_numbers = #tpu.dot_dimension_numbers<[1], [0], [0], [1], [0, 0, 1, 1], [], []>} : vector<1x10xf32>, vector<10x2xf32>, vector<1x2xf32> -> vector<1x2xf32>
    %c0_3 = arith.constant 0 : index
    %c0_4 = arith.constant 0 : index
    %3 = vector.load %arg2[%c0_3, %c0_4] : memref<2x8xf32, #tpu.memory_space<vmem>>, vector<2x8xf32>
    %cst_5 = arith.constant dense<0.000000e+00> : vector<2xf32>
    %4 = vector.multi_reduction <add>, %3, %cst_5 [1] : vector<2x8xf32> to vector<2xf32>
    %cst_6 = arith.constant 1.250000e-01 : f32
    %5 = vector.broadcast %cst_6 : f32 to vector<2xf32>
    %6 = arith.mulf %4, %5 : vector<2xf32>
    %7 = vector.shape_cast %6 : vector<2xf32> to vector<1x2xf32>
    %8 = arith.addf %2, %7 : vector<1x2xf32>
    %c0_7 = arith.constant 0 : index
    %c0_8 = arith.constant 0 : index
    %9 = vector.load %arg3[%c0_7, %c0_8] : memref<1x2xf32, #tpu.memory_space<vmem>>, vector<1x2xf32>
    tpu.vector_store %arg3[%c0_7, %c0_8], %8 {strides = array<i32>} : memref<1x2xf32, #tpu.memory_space<vmem>>, vector<1x2xf32>,
    return
  }
}

</mosaic_0001>

<llo_original>
// kernel: fused_forward.1
$region0: #{fused_forward.1}
  #allocation0 [shape = 'u32[]', space=smem, size = 0x4, offset = 0x4, fixed_abs, tag = 'smem constant byte address 0x4 - core index']
  #allocation1 [shape = 'u32[144,128]{1,0:T(1,128)}', space=vmem, size = 0x12000, scoped, tag = 'internal scratch']
  %s0 = inlined_call_operand.vmem [shape: f32[3,10], index: 0, kind: input, shape index: {}]
  %s1 = inlined_call_operand.vmem [shape: f32[10,2], index: 1, kind: input, shape index: {}]
  %s2 = inlined_call_operand.vmem [shape: f32[2,8], index: 2, kind: input, shape index: {}]
  %s3 = inlined_call_operand.hbm [shape: f32[1,2], index: 3, kind: output, shape index: {}]
  %s4 = sld [smem:[#allocation0]]
  $region22: #{fused_forward.1} parent=0
    _
  %s6 = ssub.s32 1, %s4
  %s7 = scalar_select 0, %s6, %s4
  $region1: #{fused_forward.1} parent=0
    #allocation2 [shape = 'u8[512]{0}', space=vmem, size = 0x400, scoped, tag = 'output window, operand 0, single buffered']
    #allocation3 [shape = 's32[1]{0}', space=sflag, size = 0x4, scoped, tag = 'scoped memory for fused_forward.1']
    %8 = vsyncpa [#allocation3], 0
    // Predicated region
    $region2: #{fused_forward.1} parent=1 // pred_check
      _
    $region3: #{fused_forward.1} parent=1 // pred_check_branch
      %10 = sbr.rel (0) target = $region5
    $region4: #{fused_forward.1} parent=1 // pred_region
      _
    $region5: #{fused_forward.1} parent=1 // pred_fallthru
      _
    // Predicated region
    $region6: #{fused_forward.1} parent=1 // pred_check
      _
    $region7: #{fused_forward.1} parent=1 // pred_check_branch
      %12 = sbr.rel (0) target = $region9
    $region8: #{fused_forward.1} parent=1 // pred_region
      _
    $region9: #{fused_forward.1} parent=1 // pred_fallthru
      _
    // Predicated region
    $region10: #{fused_forward.1} parent=1 // pred_check
      _
    $region11: #{fused_forward.1} parent=1 // pred_check_branch
      %14 = sbr.rel (0) target = $region13
    $region12: #{fused_forward.1} parent=1 // pred_region
      _
    $region13: #{fused_forward.1} parent=1 // pred_fallthru
      _
    %v15 = vld [vmem:[%s0] sm:$0x1]
    %v16 = vld [vmem:[%s1] sm:$0xff]
    %v17 = vld [vmem:[%s1 + $0x8] sm:$0x3]
    %v18 = vld [vmem:[%s2] sm:$0x3]
    %vm19 = vcmask 58368
    %v20 = vsel %vm19, %v18, 0.0
    %21 = vadd.xlane.f32.xlu0 %v20
    %v22 = vpop.xlane.xlu0 %21
    %v23 = vmul.f32 %v22, 0.125
    %v25 = vlaneseq
    %v26 = vand.u32 %v25, 127
    %v27 = vlaneseq
    %v28 = vshrl.u32 %v27, 7
    %v29 = vsub.s32 %v26, %v28
    %v30 = vrot.slane %v23, %v29
    %vm32 = vcmask 80896
    %v34 = vsel %vm32, %v15, 0
    %vm36 = vcmask 1041408
    %v38 = vsel %vm36, %v17, 0
    %40 = vmatprep.subr.mxu0 0.0
    %41 = vmatpush1.msra.mxu0 0.0
    %42 = vmatprep.subr.mxu0 0.0
    %43 = vmatpush1.msra.mxu0 0.0
    %44 = vmatprep.subr.mxu0 0.0
    %45 = vmatpush1.msra.mxu0 0.0
    %46 = vmatprep.subr.mxu0 0.0
    %47 = vmatpush1.msra.mxu0 0.0
    %48 = vmatprep.subr.mxu0 0.0
    %49 = vmatpush1.msra.mxu0 0.0
    %50 = vmatprep.subr.mxu0 0.0
    %51 = vmatpush1.msra.mxu0 0.0
    %52 = vmatprep.subr.mxu0 0.0
    %53 = vmatpush1.msra.mxu0 0.0
    %54 = vmatprep.subr.mxu0 0.0
    %55 = vmatpush1.msra.mxu0 0.0
    %56 = vmatprep.subr.mxu0 0.0
    %57 = vmatpush1.msra.mxu0 0.0
    %58 = vmatprep.subr.mxu0 0.0
    %59 = vmatpush1.msra.mxu0 0.0
    %60 = vmatprep.subr.mxu0 0.0
    %61 = vmatpush1.msra.mxu0 0.0
    %62 = vmatprep.subr.mxu0 0.0
    %63 = vmatpush1.msra.mxu0 0.0
    %64 = vmatprep.subr.mxu0 0.0
    %65 = vmatpush1.msra.mxu0 0.0
    %66 = vmatprep.subr.mxu0 0.0
    %67 = vmatpush1.msra.mxu0 0.0
    %68 = vmatprep.subr.mxu0 0.0
    %69 = vmatpush1.msra.mxu0 %v38
    %70 = vmatprep.subr.mxu0 0.0
    %71 = vmatpush1.msra.mxu0 %v16
    %72 = vmatprep.subr.mxu0 0.0
    %73 = vmatpush2.msra.mxu0 0.0
    %74 = vmatprep.subr.mxu0 0.0
    %75 = vmatpush2.msra.mxu0 0.0
    %76 = vmatprep.subr.mxu0 0.0
    %77 = vmatpush2.msra.mxu0 0.0
    %78 = vmatprep.subr.mxu0 0.0
    %79 = vmatpush2.msra.mxu0 0.0
    %80 = vmatprep.subr.mxu0 0.0
    %81 = vmatpush2.msra.mxu0 0.0
    %82 = vmatprep.subr.mxu0 0.0
    %83 = vmatpush2.msra.mxu0 0.0
    %84 = vmatprep.subr.mxu0 0.0
    %85 = vmatpush2.msra.mxu0 0.0
    %86 = vmatprep.subr.mxu0 0.0
    %87 = vmatpush2.msra.mxu0 0.0
    %88 = vmatprep.subr.mxu0 0.0
    %89 = vmatpush2.msra.mxu0 0.0
    %90 = vmatprep.subr.mxu0 0.0
    %91 = vmatpush2.msra.mxu0 0.0
    %92 = vmatprep.subr.mxu0 0.0
    %93 = vmatpush2.msra.mxu0 0.0
    %94 = vmatprep.subr.mxu0 0.0
    %95 = vmatpush2.msra.mxu0 0.0
    %96 = vmatprep.subr.mxu0 0.0
    %97 = vmatpush2.msra.mxu0 0.0
    %98 = vmatprep.subr.mxu0 0.0
    %99 = vmatpush2.msra.mxu0 0.0
    %100 = vmatprep.subr.mxu0 0.0
    %101 = vmatpush2.msra.mxu0 0.0
    %102 = vmatprep.subr.mxu0 0.0
    %103 = vmatpush2.msra.mxu0 0.0
    %104 = vmatprep.mubr.f32.mxu0 0.0
    %105 = vmatmul.mubr.f32.gmra.mxu0 %v34
    %v106 = vpop.f32.mrf.mxu0
    %v107 = vadd.f32 %v30, %v106
    %v108 = vpop.f32.mrf.mxu0
    %109 = vdwg.mxu0
    %vm110 = vcmask 8192
    %111 = vst.msk [vmem:[#allocation2] sm:$0x1] %vm110, %v107
    // Predicated region
    $region14: #{fused_forward.1} parent=1 // pred_check
      _
    $region15: #{fused_forward.1} parent=1 // pred_check_branch
      %113 = sbr.rel (0) target = $region17
    $region16: #{fused_forward.1} parent=1 // pred_region
      %s115 = ssub.s32 16, 16
      %116 = vsyncadd [#allocation3], %s115
      %s118 = sshll.u32 [#allocation2], 4
      %s119 = int_to_ptr.vmem [resolvable:$true] %s118
      %121 = dma.vmem_to_hbm [thread:$0]  %s119, 16, %s3, [#allocation3]
    $region17: #{fused_forward.1} parent=1 // pred_fallthru
      _
    // Predicated region
    $region18: #{fused_forward.1} parent=1 // pred_check
      _
    $region19: #{fused_forward.1} parent=1 // pred_check_branch
      %123 = sbr.rel (0) target = $region21
    $region20: #{fused_forward.1} parent=1 // pred_region
      %124 = dma.done [#allocation3], 16
    $region21: #{fused_forward.1} parent=1 // pred_fallthru
      _
    %125 = vsyncpa [#allocation3], 1

</llo_original>
